<compile_context>
chip_gen: v7x
topology: tpu7x:2x2x1
jax: 0.10.0
libtpu: 0.0.40
codegen_flags: <defaults>
</compile_context>

<pallas_src>
from abc import ABCMeta, abstractmethod
import math

import jax
import jax.numpy as jnp
from jax.experimental import pallas as pl
from jax.experimental.pallas import tpu as pltpu


def _copy_kernel(x_ref, o_ref):
    # Degenerate forward: pass the batch tile through unchanged.
    o_ref[...] = x_ref[...]


def _vmem_capacity_bytes():
    """Per-core VMEM capacity; conservative fallback = 64 MiB (v7x per-TC)."""
    try:
        info = pltpu.get_tpu_info()
        cap = getattr(info, "vmem_capacity_bytes", None)
        if cap:
            return int(cap)
    except Exception:
        pass
    return 64 * 1024 * 1024


def _pallas_identity_2d(x2d):
    """Copy an [R, L] lane-dense slab through VMEM with a 1-D grid over rows."""
    R, L = x2d.shape
    itemsize = jnp.dtype(x2d.dtype).itemsize
    # dtype-aware sublane packing multiple (keeps stores unmasked).
    sub = {4: 8, 2: 16, 1: 32}.get(itemsize, 8)

    # Tile budget from VMEM capacity: live VMEM ~= 4 x tile (in+out, 2 buffers).
    cap = _vmem_capacity_bytes()
    tile_budget = max(2 << 20, min(8 << 20, cap // 16))  # 4 MiB v7x, 8 MiB v5e/v6e

    rows_fit = max(sub, (tile_budget // (L * itemsize)) // sub * sub)
    tr = min(rows_fit, R)

    # For large inputs that still fit one tile, split into >=2 row tiles so the
    # "parallel" axis can shard across v7x's 2 TensorCores.
    if tr == R and R >= 2 * sub and R * L * itemsize >= (4 << 20):
        cand = -(-(-(-R // 2)) // sub) * sub  # ceil(R/2) rounded up to sub
        if cand < R:
            tr = cand

    grid = (pl.cdiv(R, tr),)
    live_bytes = 4 * tr * L * itemsize
    vmem_limit = max(8 << 20, min(int(live_bytes * 3 // 2), 64 << 20))

    return pl.pallas_call(
        _copy_kernel,
        out_shape=jax.ShapeDtypeStruct((R, L), x2d.dtype),
        grid=grid,
        in_specs=[pl.BlockSpec((tr, L), lambda i: (i, 0))],
        out_specs=pl.BlockSpec((tr, L), lambda i: (i, 0)),
        input_output_aliases={0: 0},
        cost_estimate=pl.CostEstimate(
            flops=0, transcendentals=0, bytes_accessed=2 * R * L * itemsize
        ),
        compiler_params=pltpu.CompilerParams(
            dimension_semantics=("parallel",),
            vmem_limit_bytes=vmem_limit,
        ),
    )(x2d)


@jax.jit
def _pallas_passthrough(batch):
    """On-device pass-through via the Pallas copy kernel (template path)."""
    shape = batch.shape
    n = math.prod(shape)
    # Lane-dense layout: flatten, pad to a multiple of 128 (full-width vst),
    # pick the largest lane width <= 2048 that divides the padded length.
    n_pad = ((n + 127) // 128) * 128
    lanes = 128
    for cand in (2048, 1024, 512, 256, 128):
        if n_pad % cand == 0:
            lanes = cand
            break
    flat = batch.reshape(-1)
    if n_pad != n:
        # TODO(synk): padding adds one small extra copy; only taken when the
        # element count is not a multiple of 128.
        flat = jnp.pad(flat, (0, n_pad - n))
    rows = n_pad // lanes
    # TODO(synk): verify in xprof that this reshape does not materialize a
    # relayout copy for exotic input layouts; for contiguous batches it is free.
    x2d = flat.reshape(rows, lanes)
    y2d = _pallas_identity_2d(x2d)
    return y2d.reshape(-1)[:n].reshape(shape)


class BaseBackbone(metaclass=ABCMeta):
    """JAX/Pallas port of the PyTorch BaseBackbone ABC."""

    name = "base"

    def __init__(self, categorical_ids):
        self.categorical_ids = categorical_ids

    @classmethod
    def get_name(cls):
        return cls.name

    @abstractmethod
    def get_output_dim(self):
        pass

    @abstractmethod
    def forward(self, batch):
        pass


class _PassThroughBackbone(BaseBackbone):
    """Minimal concrete instantiation: forward is an identity over the batch,
    the only behavior the abstract base class itself makes definable."""

    name = "passthrough"

    def __init__(self, categorical_ids, device_copy=False):
        super().__init__(categorical_ids)
        self._device_copy = device_copy

    def get_output_dim(self):
        # TODO(synk): defined by concrete subclasses; the base class fixes none.
        return None

    def forward(self, batch):
        if self._device_copy:
            # Template path: explicit on-device pass-through via Pallas.
            return _pallas_passthrough(batch)
        # Fast path (review #1): identity needs no kernel and no HBM traffic.
        return batch


if __name__ == "__main__":
    key = jax.random.PRNGKey(0)
    # Small NCHW batch consistent with a conv-backbone input.
    x = jax.random.normal(key, (2, 4, 16, 16), dtype=jnp.float32)

    cat_ids = {"pad": 0, "mask": 1}

    # Default forward: zero-cost identity.
    backbone = _PassThroughBackbone(categorical_ids=cat_ids)
    y_fast = jax.block_until_ready(backbone.forward(x))

    # Template forward: run the Pallas pass-through kernel once.
    device_backbone = _PassThroughBackbone(categorical_ids=cat_ids, device_copy=True)
    y = jax.block_until_ready(device_backbone.forward(x))

    assert y.shape == x.shape and y.dtype == x.dtype
    assert bool(jnp.allclose(y, x))
    assert bool(jnp.allclose(y_fast, x))
    print("KERNEL_OK")
</pallas_src>

<mosaic_0001>
module attributes {stable_mosaic.version = 11 : i64} {
  func.func @_copy_kernel(%arg0: i32, %arg1: memref<1x2048xf32, #tpu.memory_space<vmem>>, %arg2: memref<1x2048xf32, #tpu.memory_space<vmem>>) attributes {dimension_semantics = [#tpu.dimension_semantics<parallel>], iteration_bounds = array<i64: 1>, scalar_prefetch = 0 : i64, scratch_operands = 0 : i64, tpu.core_type = #tpu.core_type<tc>, window_params = [{transform_indices = @transform_0, window_bounds = array<i64: 1, 2048>}, {transform_indices = @transform_1, window_bounds = array<i64: 1, 2048>}]} {
    %c0 = arith.constant 0 : index
    %c0_0 = arith.constant 0 : index
    %0 = vector.load %arg1[%c0, %c0_0] : memref<1x2048xf32, #tpu.memory_space<vmem>>, vector<1x2048xf32>
    %c0_1 = arith.constant 0 : index
    %c0_2 = arith.constant 0 : index
    %1 = vector.load %arg2[%c0_1, %c0_2] : memref<1x2048xf32, #tpu.memory_space<vmem>>, vector<1x2048xf32>
    tpu.vector_store %arg2[%c0_1, %c0_2], %0 {strides = array<i32>} : memref<1x2048xf32, #tpu.memory_space<vmem>>, vector<1x2048xf32>,
    return
  }
  func.func @transform_0(%arg0: i32) -> (i32, i32) {
    %c0_i32 = arith.constant 0 : i32
    %c0_i32_0 = arith.constant 0 : i32
    return %arg0, %c0_i32 : i32, i32
  }
  func.func @transform_1(%arg0: i32) -> (i32, i32) {
    %c0_i32 = arith.constant 0 : i32
    %c0_i32_0 = arith.constant 0 : i32
    return %arg0, %c0_i32 : i32, i32
  }
}

</mosaic_0001>

<llo_original>
// kernel: _pallas_passthrough.1
$region0: #{_pallas_passthrough.1}
  #allocation0 [shape = 'u32[]', space=smem, size = 0x4, offset = 0x4, fixed_abs, tag = 'smem constant byte address 0x4 - core index']
  #allocation1 [shape = 'u32[144,128]{1,0:T(1,128)}', space=vmem, size = 0x12000, scoped, tag = 'internal scratch']
  %s0 = inlined_call_operand.vmem [shape: f32[1,2048], index: 0, kind: input, shape index: {}, may-alias: {0,1}]
  %s1 = inlined_call_operand.vmem [shape: f32[1,2048], index: 1, kind: output, shape index: {}, may-alias: {0,1}]
  %s2 = sld [smem:[#allocation0]]
  $region14: #{_pallas_passthrough.1} parent=0
    _
  %s4 = ssub.s32 1, %s2
  %s5 = scalar_select 0, %s4, %s2
  // Predicated region
  $region2: #{_pallas_passthrough.1} parent=0 // pred_check
    _
  $region3: #{_pallas_passthrough.1} parent=0 // pred_check_branch
    %7 = sbr.rel (0) target = $region5
  $region4: #{_pallas_passthrough.1} parent=0 // pred_region
    _
  $region5: #{_pallas_passthrough.1} parent=0 // pred_fallthru
    _
  %v8 = vld [vmem:[%s0] sm:$0xff]
  %v9 = vld [vmem:[%s0 + $0x8] sm:$0xff]
  %10 = vst [vmem:[%s1] sm:$0xff] %v8
  %11 = vst [vmem:[%s1 + $0x8] sm:$0xff] %v9
  // Predicated region
  $region6: #{_pallas_passthrough.1} parent=0 // pred_check
    _
  $region7: #{_pallas_passthrough.1} parent=0 // pred_check_branch
    %13 = sbr.rel (0) target = $region9
  $region8: #{_pallas_passthrough.1} parent=0 // pred_region
    _
  $region9: #{_pallas_passthrough.1} parent=0 // pred_fallthru
    _
  // Predicated region
  $region10: #{_pallas_passthrough.1} parent=0 // pred_check
    _
  $region11: #{_pallas_passthrough.1} parent=0 // pred_check_branch
    %15 = sbr.rel (0) target = $region13
  $region12: #{_pallas_passthrough.1} parent=0 // pred_region
    _
  $region13: #{_pallas_passthrough.1} parent=0 // pred_fallthru
    _

</llo_original>
